<compile_context>
chip_gen: v7x
topology: tpu7x:2x2x1
jax: 0.10.0
libtpu: 0.0.40
codegen_flags: <defaults>
</compile_context>

<pallas_src>
import functools

import jax
import jax.numpy as jnp
from jax.experimental import pallas as pl
from jax.experimental.pallas import tpu as pltpu


def _round_up(x, m):
    return ((x + m - 1) // m) * m


def _cdiv(a, b):
    return (a + b - 1) // b


# ---------------------------------------------------------------------------
# Kernels
# ---------------------------------------------------------------------------
def _linear_kernel_acc(x_ref, w_ref, b_ref, o_ref, acc_ref, *, mxu_dtype):
    """grid = (i, j, k); k innermost with a resident f32 VMEM accumulator."""
    k = pl.program_id(2)

    @pl.when(k == 0)
    def _():
        acc_ref[...] = jnp.zeros_like(acc_ref)

    acc_ref[...] += jnp.dot(
        x_ref[...].astype(mxu_dtype),
        w_ref[...].astype(mxu_dtype),
        preferred_element_type=jnp.float32,
    )

    @pl.when(k == pl.num_programs(2) - 1)
    def _():
        o_ref[...] = (
            acc_ref[...] + b_ref[...].astype(jnp.float32)
        ).astype(o_ref.dtype)


def _linear_kernel_single_k(x_ref, w_ref, b_ref, o_ref, *, mxu_dtype):
    """Fast path when the whole K fits in one tile: no scratch round-trip."""
    acc = jnp.dot(
        x_ref[...].astype(mxu_dtype),
        w_ref[...].astype(mxu_dtype),
        preferred_element_type=jnp.float32,
    )
    o_ref[...] = (acc + b_ref[...].astype(jnp.float32)).astype(o_ref.dtype)


# ---------------------------------------------------------------------------
# Generation-aware sizing helpers
# ---------------------------------------------------------------------------
def _tpu_memory_model():
    """Return (vmem_capacity_bytes, looks_like_v7x)."""
    cap = 128 * 1024 * 1024
    v7x = False
    try:
        info = pltpu.get_tpu_info()
        c = getattr(info, "vmem_capacity_bytes", None)
        if c:
            cap = int(c)
    except Exception:
        pass
    try:
        kind = jax.devices()[0].device_kind.lower()
        if "v7" in kind or "7x" in kind:
            v7x = True
    except Exception:
        pass
    if cap <= 64 * 1024 * 1024:
        v7x = True
    if v7x:
        cap = min(cap, 64 * 1024 * 1024)
    return cap, v7x


def _vmem_need(tm, tn, tk, x_bytes, w_bytes, o_bytes, w_bufs=2):
    return (2 * tm * tk * x_bytes            # double-buffered x tiles
            + w_bufs * tk * tn * w_bytes     # weight tiles (2 or 3 buffers)
            + 2 * tn * 4                     # bias tile
            + 2 * tm * tn * o_bytes          # double-buffered output tiles
            + tm * tn * 4)                   # f32 accumulator scratch


def prepare_linear_params(w, b, *, lane=128):
    """One-time prep: transpose PyTorch-layout weight (D_out, D_in) to
    (D_in, D_out) and zero-pad both dims to multiples of 128 so the per-call
    wrapper never re-copies the full weight. Returns (w_t_padded, b_padded,
    d_out) -- pass d_out=d_out to linear_forward."""
    d_out, d_in = w.shape
    kp = _round_up(d_in, lane)
    np_ = _round_up(d_out, lane)
    w_t = jnp.transpose(w)
    if (kp, np_) != (d_in, d_out):
        w_t = jnp.pad(w_t, ((0, kp - d_in), (0, np_ - d_out)))
    b2 = jnp.reshape(b, (1, -1))
    if np_ != d_out:
        b2 = jnp.pad(b2, ((0, 0), (0, np_ - d_out)))
    return w_t, b2, d_out


# ---------------------------------------------------------------------------
# Forward wrapper
# ---------------------------------------------------------------------------
def linear_forward(x, w_t, b, *, tm=None, tn=None, tk=None,
                   mxu_dtype=None, out_dtype=None, d_out=None):
    """y = x @ w_t + b  (same semantics as nn.Linear with weight.T == w_t).

    x    : (B, D_in)
    w_t  : (K, N)  -- PyTorch weight transposed, optionally pre-padded
    b    : (N,) or (1, N), optionally pre-padded
    d_out: logical output width when passing pre-padded weights.
    """
    B, D_in = x.shape
    K_w, N_w = w_t.shape
    assert K_w >= D_in, "weight K dim smaller than input feature dim"
    D_out = int(d_out) if d_out is not None else int(N_w)
    assert D_out <= N_w

    out_dtype = out_dtype or x.dtype
    # MXU input dtype: bf16 whenever either operand is bf16 (avoids silent
    # promotion of a bf16 weight back to f32 in-kernel); native otherwise.
    if mxu_dtype is None:
        if x.dtype == jnp.bfloat16 or w_t.dtype == jnp.bfloat16:
            mxu_dtype = jnp.bfloat16
        else:
            mxu_dtype = x.dtype

    x_bytes = jnp.dtype(x.dtype).itemsize
    w_bytes = jnp.dtype(w_t.dtype).itemsize
    o_bytes = jnp.dtype(out_dtype).itemsize

    # ----- generation-aware VMEM budget ------------------------------------
    vmem_cap, v7x = _tpu_memory_model()
    gen_cap = (48 if v7x else 100) * 1024 * 1024
    gen_cap = min(gen_cap, int(vmem_cap * 0.85))
    tile_budget = int(gen_cap * 0.8)

    m_align = 16 if x_bytes < 4 else 8       # bf16 packs 16 rows per sublane
    m_full = _round_up(B, m_align)
    n_full = _round_up(N_w, 128)
    k_full = _round_up(K_w, 128)

    auto = tm is None and tn is None and tk is None

    # Large defaults: fill VMEM instead of idling it; bigger N/K tiles for
    # bf16 weights; v7x (64 MiB per TC) gets the smaller set.
    if tm is None:
        tm = 512
    if tn is None:
        tn = 1024 if (w_bytes >= 4 or v7x) else 2048
    if tk is None:
        tk = 1024 if (w_bytes >= 4 or v7x) else 2048

    tm = min(tm, m_full)
    tn = min(tn, n_full)
    tk = min(tk, k_full)

    # Small-batch / weight-streaming regime: grow weight tiles toward budget.
    if auto and tm <= 64:
        while (tk < k_full and 2 * tk <= 4096 and
               _vmem_need(tm, tn, min(2 * tk, k_full),
                          x_bytes, w_bytes, o_bytes) <= tile_budget):
            tk = min(2 * tk, k_full)
        while (tn < n_full and 2 * tn <= 4096 and
               _vmem_need(tm, min(2 * tn, n_full), tk,
                          x_bytes, w_bytes, o_bytes) <= tile_budget):
            tn = min(2 * tn, n_full)

    # Shrink to fit the budget, preserving (8/16, 128) alignment.
    while _vmem_need(tm, tn, tk, x_bytes, w_bytes, o_bytes) > tile_budget:
        if tk >= tn and tk > 128:
            tk = max(128, (tk // 2) // 128 * 128)
        elif tn > 128:
            tn = max(128, (tn // 2) // 128 * 128)
        elif tm > m_align:
            tm = max(m_align, (tm // 2) // m_align * m_align)
        else:
            break

    # v7x has 2 TensorCores sharing the "parallel" axes: give both work.
    if auto and v7x and _cdiv(m_full, tm) * _cdiv(n_full, tn) < 2:
        c = n_full // 128
        if c >= 2:
            half = c // 2
            tn = 128 * (half if c % half == 0 else 1)
        elif m_full >= 2 * m_align:
            tm = max(m_align, (m_full // 2) // m_align * m_align)

    Mp = _round_up(B, tm)
    Np = _round_up(N_w, tn)
    Kp = _round_up(K_w, tk)
    grid = (Mp // tm, Np // tn, Kp // tk)
    gk = grid[2]

    # 3-deep weight buffering when per-step compute is too small to hide DMA.
    deep_buffer = (tm <= 64 and gk >= 4 and
                   _vmem_need(tm, tn, tk, x_bytes, w_bytes, o_bytes,
                              w_bufs=3) <= gen_cap)

    # Per-call padding. NOTE: hoist the weight pad out of the hot path by
    # calling prepare_linear_params() once at init (and/or choosing tn/tk
    # that divide the prepared dims); then only x / bias may need padding.
    xp = x
    if Mp != B or Kp != D_in:
        xp = jnp.pad(x, ((0, Mp - B), (0, Kp - D_in)))
    wp = w_t
    if Kp != K_w or Np != N_w:
        wp = jnp.pad(w_t, ((0, Kp - K_w), (0, Np - N_w)))
    bp = jnp.reshape(b, (1, -1))
    if bp.shape[1] != Np:
        bp = jnp.pad(bp, ((0, 0), (0, Np - bp.shape[1])))

    cost = pl.CostEstimate(
        flops=2 * B * D_in * D_out,
        transcendentals=0,
        bytes_accessed=(B * D_in * x_bytes + K_w * N_w * w_bytes
                        + N_w * jnp.dtype(b.dtype).itemsize
                        + B * D_out * o_bytes),
    )

    need = _vmem_need(tm, tn, tk, x_bytes, w_bytes, o_bytes,
                      w_bufs=3 if deep_buffer else 2)
    vmem_limit = int(min(max(2 * need, 8 * 1024 * 1024), gen_cap))
    vmem_limit = max(vmem_limit, int(need * 1.25))

    def _weight_spec():
        idx = lambda i, j, k: (k, j)
        if deep_buffer:
            try:
                return pl.BlockSpec((tk, tn), idx,
                                    pipeline_mode=pl.Buffered(3))
            except Exception:
                pass
        return pl.BlockSpec((tk, tn), idx)

    in_specs = [
        pl.BlockSpec((tm, tk), lambda i, j, k: (i, k)),
        _weight_spec(),
        pl.BlockSpec((1, tn), lambda i, j, k: (0, j)),
    ]
    out_spec = pl.BlockSpec((tm, tn), lambda i, j, k: (i, j))

    if gk == 1:
        kernel = functools.partial(_linear_kernel_single_k, mxu_dtype=mxu_dtype)
        scratch = []
    else:
        kernel = functools.partial(_linear_kernel_acc, mxu_dtype=mxu_dtype)
        scratch = [pltpu.VMEM((tm, tn), jnp.float32)]

    out = pl.pallas_call(
        kernel,
        out_shape=jax.ShapeDtypeStruct((Mp, Np), out_dtype),
        grid_spec=pltpu.PrefetchScalarGridSpec(
            num_scalar_prefetch=0,
            grid=grid,
            in_specs=in_specs,
            out_specs=out_spec,
            scratch_shapes=scratch,
        ),
        compiler_params=pltpu.CompilerParams(
            dimension_semantics=("parallel", "parallel", "arbitrary"),
            vmem_limit_bytes=vmem_limit,
        ),
        cost_estimate=cost,
    )(xp, wp, bp)

    if Mp != B or Np != D_out:
        out = out[:B, :D_out]
    return out


def init_linear_params(key, input_dim, output_dim):
    # Match nn.Linear default init: U(-1/sqrt(in), 1/sqrt(in)) for W and b.
    kw, kb = jax.random.split(key)
    bound = 1.0 / jnp.sqrt(jnp.float32(input_dim))
    w = jax.random.uniform(
        kw, (output_dim, input_dim), jnp.float32, minval=-bound, maxval=bound
    )
    b = jax.random.uniform(
        kb, (output_dim,), jnp.float32, minval=-bound, maxval=bound
    )
    return w, b


if __name__ == "__main__":
    key = jax.random.PRNGKey(0)
    k_x, k_p, k_x2, k_p2 = jax.random.split(key, 4)

    # --- Case 1: the module's shapes, single-step fast path, pre-padded W --
    batch, input_dim, output_dim = 8, 32, 16
    x = jax.random.normal(k_x, (batch, input_dim), jnp.float32)
    w, b = init_linear_params(k_p, input_dim, output_dim)
    w_t_p, b_p, d_out = prepare_linear_params(w, b)   # one-time pad/transpose
    y = jax.block_until_ready(linear_forward(x, w_t_p, b_p, d_out=d_out))
    y_ref = x @ w.T + b
    assert y.shape == (batch, output_dim)
    assert jnp.allclose(y, y_ref, atol=1e-5, rtol=1e-5)

    # --- Case 2: multi-tile grid exercising the K-accumulator path ---------
    batch2, in2, out2 = 16, 384, 256
    x2 = jax.random.normal(k_x2, (batch2, in2), jnp.float32)
    w2, b2 = init_linear_params(k_p2, in2, out2)
    y2 = jax.block_until_ready(
        linear_forward(x2, w2.T, b2, tm=8, tn=128, tk=128))
    y2_ref = x2 @ w2.T + b2
    assert y2.shape == (batch2, out2)
    assert jnp.allclose(y2, y2_ref, atol=1e-4, rtol=1e-5)

    # --- Case 3: bf16 MXU path (bf16 activations + weights, f32 accum) -----
    xb = x.astype(jnp.bfloat16)
    wb_t = w.T.astype(jnp.bfloat16)
    y3 = jax.block_until_ready(linear_forward(xb, wb_t, b))
    assert y3.shape == (batch, output_dim)
    assert y3.dtype == jnp.bfloat16
    assert jnp.allclose(y3.astype(jnp.float32), y_ref, atol=5e-2, rtol=5e-2)

    print("KERNEL_OK")
</pallas_src>

<mosaic_0001>
module attributes {stable_mosaic.version = 11 : i64} {
  func.func @_linear_kernel_single_k(%arg0: i32, %arg1: i32, %arg2: i32, %arg3: memref<8x128xf32, #tpu.memory_space<vmem>>, %arg4: memref<128x128xf32, #tpu.memory_space<vmem>>, %arg5: memref<1x128xf32, #tpu.memory_space<vmem>>, %arg6: memref<8x128xf32, #tpu.memory_space<vmem>>) attributes {dimension_semantics = [#tpu.dimension_semantics<parallel>, #tpu.dimension_semantics<parallel>, #tpu.dimension_semantics<arbitrary>], iteration_bounds = array<i64: 1, 1, 1>, scalar_prefetch = 0 : i64, scratch_operands = 0 : i64, tpu.core_type = #tpu.core_type<tc>, window_params = [{transform_indices = @transform_0, window_bounds = array<i64: 8, 128>}, {transform_indices = @transform_1, window_bounds = array<i64: 128, 128>}, {transform_indices = @transform_2, window_bounds = array<i64: 1, 128>}, {transform_indices = @transform_3, window_bounds = array<i64: 8, 128>}]} {
    %c0 = arith.constant 0 : index
    %c0_0 = arith.constant 0 : index
    %0 = vector.load %arg3[%c0, %c0_0] : memref<8x128xf32, #tpu.memory_space<vmem>>, vector<8x128xf32>
    %c0_1 = arith.constant 0 : index
    %c0_2 = arith.constant 0 : index
    %1 = vector.load %arg4[%c0_1, %c0_2] : memref<128x128xf32, #tpu.memory_space<vmem>>, vector<128x128xf32>
    %cst = arith.constant dense<0.000000e+00> : vector<8x128xf32>
    %2 = tpu.matmul %0, %1, %cst {dimension_numbers = #tpu.dot_dimension_numbers<[1], [0], [0], [1], [0, 0, 1, 1], [], []>} : vector<8x128xf32>, vector<128x128xf32>, vector<8x128xf32> -> vector<8x128xf32>
    %c0_3 = arith.constant 0 : index
    %c0_4 = arith.constant 0 : index
    %3 = vector.load %arg5[%c0_3, %c0_4] : memref<1x128xf32, #tpu.memory_space<vmem>>, vector<1x128xf32>
    %4 = vector.broadcast %3 : vector<1x128xf32> to vector<8x128xf32>
    %5 = arith.addf %2, %4 : vector<8x128xf32>
    %c0_5 = arith.constant 0 : index
    %c0_6 = arith.constant 0 : index
    %6 = vector.load %arg6[%c0_5, %c0_6] : memref<8x128xf32, #tpu.memory_space<vmem>>, vector<8x128xf32>
    tpu.vector_store %arg6[%c0_5, %c0_6], %5 {strides = array<i32>} : memref<8x128xf32, #tpu.memory_space<vmem>>, vector<8x128xf32>,
    return
  }
  func.func @transform_0(%arg0: i32, %arg1: i32, %arg2: i32) -> (i32, i32) {
    %c0_i32 = arith.constant 0 : i32
    return %arg0, %arg2 : i32, i32
  }
  func.func @transform_1(%arg0: i32, %arg1: i32, %arg2: i32) -> (i32, i32) {
    %c0_i32 = arith.constant 0 : i32
    return %arg2, %arg1 : i32, i32
  }
  func.func @transform_2(%arg0: i32, %arg1: i32, %arg2: i32) -> (i32, i32) {
    %c0_i32 = arith.constant 0 : i32
    %c0_i32_0 = arith.constant 0 : i32
    return %c0_i32, %arg1 : i32, i32
  }
  func.func @transform_3(%arg0: i32, %arg1: i32, %arg2: i32) -> (i32, i32) {
    %c0_i32 = arith.constant 0 : i32
    return %arg0, %arg1 : i32, i32
  }
}

</mosaic_0001>

<llo_original>
// kernel: tpu_custom_call.1
$region0: #{tpu_custom_call.1}
  #allocation0 [shape = 'u32[]', space=smem, size = 0x4, offset = 0x4, fixed_abs, tag = 'smem constant byte address 0x4 - core index']
  #allocation1 [shape = 'u32[144,128]{1,0:T(1,128)}', space=vmem, size = 0x12000, scoped, tag = 'internal scratch']
  %s0 = inlined_call_operand.hbm [shape: f32[8,128], index: 0, kind: input, shape index: {}]
  %s1 = inlined_call_operand.hbm [shape: f32[128,128], index: 1, kind: input, shape index: {}]
  %s2 = inlined_call_operand.vmem [shape: f32[1,128], index: 2, kind: input, shape index: {}]
  %s3 = inlined_call_operand.hbm [shape: f32[8,128], index: 3, kind: output, shape index: {}]
  %s4 = sld [smem:[#allocation0]]
  $region30: #{tpu_custom_call.1} parent=0
    _
  %s6 = ssub.s32 1, %s4
  %s7 = scalar_select 0, %s6, %s4
  $region1: #{tpu_custom_call.1} parent=0
    #allocation2 [shape = 'u8[4096]{0}', space=vmem, size = 0x1000, scoped, tag = 'input window, operand 0, single buffered']
    #allocation3 [shape = 's32[1]{0}', space=sflag, size = 0x4, scoped, tag = 'scoped memory for tpu_custom_call.1']
    #allocation4 [shape = 's32[1]{0}', space=sflag, size = 0x4, scoped, tag = 'scoped memory for tpu_custom_call.1']
    #allocation5 [shape = 'u8[65536]{0}', space=vmem, size = 0x10000, scoped, tag = 'input window, operand 1, single buffered']
    #allocation6 [shape = 's32[1]{0}', space=sflag, size = 0x4, scoped, tag = 'scoped memory for tpu_custom_call.1']
    #allocation7 [shape = 'u8[4096]{0}', space=vmem, size = 0x1000, scoped, tag = 'output window, operand 0, single buffered']
    %8 = vsyncpa [#allocation3], 0
    %9 = vsyncpa [#allocation6], 0
    %10 = vsyncpa [#allocation4], 0
    // Predicated region
    $region2: #{tpu_custom_call.1} parent=1 // pred_check
      _
    $region3: #{tpu_custom_call.1} parent=1 // pred_check_branch
      %12 = sbr.rel (0) target = $region5
    $region4: #{tpu_custom_call.1} parent=1 // pred_region
      %s14 = ssub.s32 128, 128
      %15 = vsyncadd [#allocation3], %s14
      %s17 = sshll.u32 [#allocation2], 4
      %s18 = int_to_ptr.vmem [resolvable:$true] %s17
      %20 = dma.hbm_to_vmem [thread:$0]  %s0, 128, %s18, [#allocation3]
    $region5: #{tpu_custom_call.1} parent=1 // pred_fallthru
      _
    // Predicated region
    $region6: #{tpu_custom_call.1} parent=1 // pred_check
      _
    $region7: #{tpu_custom_call.1} parent=1 // pred_check_branch
      %22 = sbr.rel (0) target = $region9
    $region8: #{tpu_custom_call.1} parent=1 // pred_region
      %s24 = ssub.s32 2048, 2048
      %25 = vsyncadd [#allocation6], %s24
      %s26 = sshll.u32 [#allocation5], 4
      %s27 = int_to_ptr.vmem [resolvable:$true] %s26
      %32 = dma.hbm_to_vmem [thread:$0]  %s1, 2048, %s27, [#allocation6], 128, 128, 8
    $region9: #{tpu_custom_call.1} parent=1 // pred_fallthru
      _
    // Predicated region
    $region10: #{tpu_custom_call.1} parent=1 // pred_check
      _
    $region11: #{tpu_custom_call.1} parent=1 // pred_check_branch
      %34 = sbr.rel (0) target = $region13
    $region12: #{tpu_custom_call.1} parent=1 // pred_region
      _
    $region13: #{tpu_custom_call.1} parent=1 // pred_fallthru
      _
    // Predicated region
    $region14: #{tpu_custom_call.1} parent=1 // pred_check
      _
    $region15: #{tpu_custom_call.1} parent=1 // pred_check_branch
      %36 = sbr.rel (0) target = $region17
    $region16: #{tpu_custom_call.1} parent=1 // pred_region
      %37 = dma.done [#allocation3], 128
    $region17: #{tpu_custom_call.1} parent=1 // pred_fallthru
      _
    // Predicated region
    $region18: #{tpu_custom_call.1} parent=1 // pred_check
      _
    $region19: #{tpu_custom_call.1} parent=1 // pred_check_branch
      %39 = sbr.rel (0) target = $region21
    $region20: #{tpu_custom_call.1} parent=1 // pred_region
      %40 = dma.done [#allocation6], 2048
    $region21: #{tpu_custom_call.1} parent=1 // pred_fallthru
      _
    %v41 = vld [vmem:[#allocation2] sm:$0xff]
    %v42 = vld [vmem:[#allocation5] sm:$0xff]
    %v43 = vld [vmem:[#allocation5 + $0x8] sm:$0xff]
    %v44 = vld [vmem:[#allocation5 + $0x10] sm:$0xff]
    %v45 = vld [vmem:[#allocation5 + $0x18] sm:$0xff]
    %v46 = vld [vmem:[#allocation5 + $0x20] sm:$0xff]
    %v47 = vld [vmem:[#allocation5 + $0x28] sm:$0xff]
    %v48 = vld [vmem:[#allocation5 + $0x30] sm:$0xff]
    %v49 = vld [vmem:[#allocation5 + $0x38] sm:$0xff]
    %v50 = vld [vmem:[#allocation5 + $0x40] sm:$0xff]
    %v51 = vld [vmem:[#allocation5 + $0x48] sm:$0xff]
    %v52 = vld [vmem:[#allocation5 + $0x50] sm:$0xff]
    %v53 = vld [vmem:[#allocation5 + $0x58] sm:$0xff]
    %v54 = vld [vmem:[#allocation5 + $0x60] sm:$0xff]
    %v55 = vld [vmem:[#allocation5 + $0x68] sm:$0xff]
    %v56 = vld [vmem:[#allocation5 + $0x70] sm:$0xff]
    %v57 = vld [vmem:[#allocation5 + $0x78] sm:$0xff]
    %v58 = vld [vmem:[%s2] sm:$0x1]
    %v60 = vlaneseq
    %v61 = vshrl.u32 %v60, 7
    %v62 = vsub.s32 0, %v61
    %v63 = vrot.slane %v58, %v62
    %65 = vmatprep.subr.mxu0 0.0
    %66 = vmatpush1.msra.mxu0 %v42
    %67 = vmatprep.subr.mxu0 0.0
    %68 = vmatpush1.msra.mxu0 %v43
    %69 = vmatprep.subr.mxu0 0.0
    %70 = vmatpush1.msra.mxu0 %v44
    %71 = vmatprep.subr.mxu0 0.0
    %72 = vmatpush1.msra.mxu0 %v45
    %73 = vmatprep.subr.mxu0 0.0
    %74 = vmatpush1.msra.mxu0 %v46
    %75 = vmatprep.subr.mxu0 0.0
    %76 = vmatpush1.msra.mxu0 %v47
    %77 = vmatprep.subr.mxu0 0.0
    %78 = vmatpush1.msra.mxu0 %v48
    %79 = vmatprep.subr.mxu0 0.0
    %80 = vmatpush1.msra.mxu0 %v49
    %81 = vmatprep.subr.mxu0 0.0
    %82 = vmatpush1.msra.mxu0 %v50
    %83 = vmatprep.subr.mxu0 0.0
    %84 = vmatpush1.msra.mxu0 %v51
    %85 = vmatprep.subr.mxu0 0.0
    %86 = vmatpush1.msra.mxu0 %v52
    %87 = vmatprep.subr.mxu0 0.0
    %88 = vmatpush1.msra.mxu0 %v53
    %89 = vmatprep.subr.mxu0 0.0
    %90 = vmatpush1.msra.mxu0 %v54
    %91 = vmatprep.subr.mxu0 0.0
    %92 = vmatpush1.msra.mxu0 %v55
    %93 = vmatprep.subr.mxu0 0.0
    %94 = vmatpush1.msra.mxu0 %v56
    %95 = vmatprep.subr.mxu0 0.0
    %96 = vmatpush1.msra.mxu0 %v57
    %97 = vmatprep.subr.mxu0 0.0
    %98 = vmatpush1.msra.mxu0 0.0
    %99 = vmatprep.subr.mxu0 0.0
    %100 = vmatpush1.msra.mxu0 0.0
    %101 = vmatprep.subr.mxu0 0.0
    %102 = vmatpush1.msra.mxu0 0.0
    %103 = vmatprep.subr.mxu0 0.0
    %104 = vmatpush1.msra.mxu0 0.0
    %105 = vmatprep.subr.mxu0 0.0
    %106 = vmatpush1.msra.mxu0 0.0
    %107 = vmatprep.subr.mxu0 0.0
    %108 = vmatpush1.msra.mxu0 0.0
    %109 = vmatprep.subr.mxu0 0.0
    %110 = vmatpush1.msra.mxu0 0.0
    %111 = vmatprep.subr.mxu0 0.0
    %112 = vmatpush1.msra.mxu0 0.0
    %113 = vmatprep.subr.mxu0 0.0
    %114 = vmatpush1.msra.mxu0 0.0
    %115 = vmatprep.subr.mxu0 0.0
    %116 = vmatpush1.msra.mxu0 0.0
    %117 = vmatprep.subr.mxu0 0.0
    %118 = vmatpush1.msra.mxu0 0.0
    %119 = vmatprep.subr.mxu0 0.0
    %120 = vmatpush1.msra.mxu0 0.0
    %121 = vmatprep.subr.mxu0 0.0
    %122 = vmatpush1.msra.mxu0 0.0
    %123 = vmatprep.subr.mxu0 0.0
    %124 = vmatpush1.msra.mxu0 0.0
    %125 = vmatprep.subr.mxu0 0.0
    %126 = vmatpush1.msra.mxu0 0.0
    %127 = vmatprep.subr.mxu0 0.0
    %128 = vmatpush1.msra.mxu0 0.0
    %129 = vmatprep.mubr.f32.mxu0 0.0
    %130 = vmatmul.mubr.f32.gmra.mrb[0].mxu0 %v41
    %v131 = vpop.f32.mrb[0].mxu0
    %v132 = vadd.f32 %v63, %v131
    %v133 = vpop.f32.mrb[0].mxu0
    %134 = vdwg.mxu0
    %135 = vst [vmem:[#allocation7] sm:$0xff] %v132
    // Predicated region
    $region22: #{tpu_custom_call.1} parent=1 // pred_check
      _
    $region23: #{tpu_custom_call.1} parent=1 // pred_check_branch
      %137 = sbr.rel (0) target = $region25
    $region24: #{tpu_custom_call.1} parent=1 // pred_region
      %s139 = ssub.s32 128, 128
      %140 = vsyncadd [#allocation4], %s139
      %s142 = sshll.u32 [#allocation7], 4
      %s143 = int_to_ptr.vmem [resolvable:$true] %s142
      %145 = dma.vmem_to_hbm [thread:$0]  %s143, 128, %s3, [#allocation4]
    $region25: #{tpu_custom_call.1} parent=1 // pred_fallthru
      _
    // Predicated region
    $region26: #{tpu_custom_call.1} parent=1 // pred_check
      _
    $region27: #{tpu_custom_call.1} parent=1 // pred_check_branch
      %147 = sbr.rel (0) target = $region29
    $region28: #{tpu_custom_call.1} parent=1 // pred_region
      %148 = dma.done [#allocation4], 128
    $region29: #{tpu_custom_call.1} parent=1 // pred_fallthru
      _
    %149 = vsyncpa [#allocation3], 1
    %150 = vsyncpa [#allocation6], 1
    %151 = vsyncpa [#allocation4], 1

</llo_original>
